<compile_context>
chip_gen: v7x
topology: tpu7x:2x2x1
jax: 0.10.0
libtpu: 0.0.40
codegen_flags: <defaults>
</compile_context>

<pallas_src>
import functools

import jax
import jax.numpy as jnp
from jax.experimental import pallas as pl
from jax.experimental.pallas import tpu as pltpu


def _round_up(x, m):
    return ((x + m - 1) // m) * m


def _pad_to(a, shape):
    pads = [(0, s - d) for d, s in zip(a.shape, shape)]
    if any(p[1] for p in pads):
        a = jnp.pad(a, pads)
    return a


# ---------------------------------------------------------------------------
# Fused path: all three layers inside one pallas_call, hidden h kept in VMEM.
# ---------------------------------------------------------------------------

def _gcn_fused_kernel(x_ref, adj_ref, w1_ref, b1_ref, w2_ref, b2_ref,
                      w3_ref, b3_ref, o_ref, h_ref):
    adj = adj_ref[...]
    # layer 1: h = relu(adj @ (x @ W1) + b1)
    s = jnp.dot(x_ref[...], w1_ref[...], preferred_element_type=jnp.float32)
    h_ref[...] = jnp.maximum(
        jnp.dot(adj, s, preferred_element_type=jnp.float32) + b1_ref[...], 0.0)
    # layer 2: h = relu(adj @ (h @ W2) + b2)   (dropout p=0 -> identity)
    s = jnp.dot(h_ref[...], w2_ref[...], preferred_element_type=jnp.float32)
    h_ref[...] = jnp.maximum(
        jnp.dot(adj, s, preferred_element_type=jnp.float32) + b2_ref[...], 0.0)
    # layer 3: out = adj @ (h @ W3) + b3   (no relu); single lane-dense store.
    s = jnp.dot(h_ref[...], w3_ref[...], preferred_element_type=jnp.float32)
    o_ref[...] = (jnp.dot(adj, s, preferred_element_type=jnp.float32)
                  + b3_ref[...]).astype(o_ref.dtype)


def _gcn_fused(params, x, adj):
    (w1, b1), (w2, b2), (w3, b3) = params
    n, f_in = x.shape
    h_dim = w1.shape[1]
    f_out = w3.shape[1]

    n_p = _round_up(n, 8)            # sublane alignment
    fin_p = _round_up(f_in, 128)     # lane-dense feature dims (MXU pads anyway)
    h_p = _round_up(h_dim, 128)
    fout_p = _round_up(f_out, 128)

    x_p = _pad_to(x.astype(jnp.float32), (n_p, fin_p))
    adj_p = _pad_to(adj.astype(jnp.float32), (n_p, n_p))
    w1_p = _pad_to(w1, (fin_p, h_p))
    b1_p = _pad_to(b1, (1, h_p))
    w2_p = _pad_to(w2, (h_p, h_p))
    b2_p = _pad_to(b2, (1, h_p))
    w3_p = _pad_to(w3, (h_p, fout_p))
    b3_p = _pad_to(b3, (1, fout_p))

    flops = 2 * (n_p * fin_p * h_p + n_p * n_p * h_p
                 + n_p * h_p * h_p + n_p * n_p * h_p
                 + n_p * h_p * fout_p + n_p * n_p * fout_p)
    bytes_accessed = 4 * (x_p.size + adj_p.size + w1_p.size + b1_p.size
                          + w2_p.size + b2_p.size + w3_p.size + b3_p.size
                          + n_p * fout_p)

    vmem_spec = pl.BlockSpec(memory_space=pltpu.MemorySpace.VMEM)
    out_p = pl.pallas_call(
        _gcn_fused_kernel,
        out_shape=jax.ShapeDtypeStruct((n_p, fout_p), jnp.float32),
        in_specs=[vmem_spec] * 8,
        out_specs=vmem_spec,
        scratch_shapes=[pltpu.VMEM((n_p, h_p), jnp.float32)],
        cost_estimate=pl.CostEstimate(flops=flops, transcendentals=0,
                                      bytes_accessed=bytes_accessed),
    )(x_p, adj_p, w1_p, b1_p, w2_p, b2_p, w3_p, b3_p)
    return out_p[:n, :f_out]


# ---------------------------------------------------------------------------
# Tiled path (large N): per layer, support = h @ W (row-tiled), then
# out = adj @ support + b (+relu) tiled over (row, K) with a VMEM accumulator.
# ---------------------------------------------------------------------------

def _support_kernel(x_ref, w_ref, o_ref):
    o_ref[...] = jnp.dot(x_ref[...], w_ref[...],
                         preferred_element_type=jnp.float32).astype(o_ref.dtype)


def _support_matmul(x, w, *, tm, out_dtype):
    n, k = x.shape
    f = w.shape[1]
    return pl.pallas_call(
        _support_kernel,
        out_shape=jax.ShapeDtypeStruct((n, f), out_dtype),
        grid=(n // tm,),
        in_specs=[
            pl.BlockSpec((tm, k), lambda i: (i, 0)),
            # constant index_map -> W fetched once, stays resident in VMEM
            pl.BlockSpec((k, f), lambda i: (0, 0)),
        ],
        out_specs=pl.BlockSpec((tm, f), lambda i: (i, 0)),
        compiler_params=pltpu.CompilerParams(
            dimension_semantics=("parallel",)),
    )(x, w)


def _adj_spmm_kernel(adj_ref, s_ref, b_ref, o_ref, acc_ref, *, apply_relu):
    @pl.when(pl.program_id(1) == 0)
    def _init():
        acc_ref[...] = jnp.zeros_like(acc_ref)

    acc_ref[...] += jnp.dot(adj_ref[...], s_ref[...],
                            preferred_element_type=jnp.float32)

    @pl.when(pl.program_id(1) == pl.num_programs(1) - 1)
    def _finalize():
        out = acc_ref[...] + b_ref[...]          # bias + relu kept in f32
        if apply_relu:
            out = jnp.maximum(out, 0.0)
        o_ref[...] = out.astype(o_ref.dtype)


def _adj_spmm(adj, s, b, *, tile, apply_relu, out_dtype):
    n = adj.shape[0]
    f = s.shape[1]
    kernel = functools.partial(_adj_spmm_kernel, apply_relu=apply_relu)
    return pl.pallas_call(
        kernel,
        out_shape=jax.ShapeDtypeStruct((n, f), out_dtype),
        grid=(n // tile, n // tile),          # reduction axis (K) last
        in_specs=[
            pl.BlockSpec((tile, tile), lambda i, k: (i, k)),   # adj tile
            pl.BlockSpec((tile, f), lambda i, k: (k, 0)),      # support tile
            pl.BlockSpec((1, f), lambda i, k: (0, 0)),         # bias, resident
        ],
        out_specs=pl.BlockSpec((tile, f), lambda i, k: (i, 0)),
        scratch_shapes=[pltpu.VMEM((tile, f), jnp.float32)],
        compiler_params=pltpu.CompilerParams(
            dimension_semantics=("parallel", "arbitrary")),
    )(adj, s, b)


def _gcn_tiled(params, x, adj, *, tile=256, use_bf16=False):
    """Tiled path for graphs whose adjacency does not fit scoped VMEM.

    tile=256 fits default scoped VMEM on v5e/v6e/v7x; go 512 on v6e (128 MiB)
    if N is large.  use_bf16 casts adj / activations / weights to bfloat16
    (f32 MXU accumulation, f32 epilogue) for ~2x HBM/MXU on v6e & v7x.
    """
    (w1, b1), (w2, b2), (w3, b3) = params
    n, f_in = x.shape
    h_dim = w1.shape[1]
    f_out = w3.shape[1]

    n_p = _round_up(n, tile)
    fin_p = _round_up(f_in, 128)
    h_p = _round_up(h_dim, 128)
    fout_p = _round_up(f_out, 128)

    cdt = jnp.bfloat16 if use_bf16 else jnp.float32

    x_p = _pad_to(x.astype(jnp.float32), (n_p, fin_p)).astype(cdt)
    adj_p = _pad_to(adj.astype(jnp.float32), (n_p, n_p)).astype(cdt)
    w1_p = _pad_to(w1, (fin_p, h_p)).astype(cdt)
    w2_p = _pad_to(w2, (h_p, h_p)).astype(cdt)
    w3_p = _pad_to(w3, (h_p, fout_p)).astype(cdt)
    b1_p = _pad_to(b1, (1, h_p))      # biases stay f32 (added to f32 acc)
    b2_p = _pad_to(b2, (1, h_p))
    b3_p = _pad_to(b3, (1, fout_p))

    # layer 1
    s = _support_matmul(x_p, w1_p, tm=tile, out_dtype=cdt)
    h = _adj_spmm(adj_p, s, b1_p, tile=tile, apply_relu=True, out_dtype=cdt)
    # layer 2 (dropout p=0 -> identity)
    s = _support_matmul(h, w2_p, tm=tile, out_dtype=cdt)
    h = _adj_spmm(adj_p, s, b2_p, tile=tile, apply_relu=True, out_dtype=cdt)
    # layer 3
    s = _support_matmul(h, w3_p, tm=tile, out_dtype=cdt)
    out = _adj_spmm(adj_p, s, b3_p, tile=tile, apply_relu=False,
                    out_dtype=jnp.float32)
    return out[:n, :f_out]


# ---------------------------------------------------------------------------
# Public forward + params init
# ---------------------------------------------------------------------------

def init_gcn_params(key, input_size, hidden_size, output_size):
    """Deterministic glorot-style init matching GCN.__init__ layer shapes."""
    sizes = [(input_size, hidden_size),
             (hidden_size, hidden_size),
             (hidden_size, output_size)]
    params = []
    for i, (fin, fout) in enumerate(sizes):
        kw, kb = jax.random.split(jax.random.fold_in(key, i))
        scale = 1.0 / jnp.sqrt(jnp.float32(fin))
        w = jax.random.uniform(kw, (fin, fout), jnp.float32, -scale, scale)
        b = jax.random.uniform(kb, (1, fout), jnp.float32, -scale, scale)
        params.append((w, b))
    return params


def gcn_forward(params, x, adj, labels=None, *, fused=None, tile=256,
                use_bf16=False):
    """GCN.forward: relu(gc1) -> dropout(0) -> relu(gc2) -> dropout(0) -> gc3."""
    del labels  # TODO(synk): indep_weights per-label selection not specified.
    if fused is None:
        n = x.shape[0]
        n_p = _round_up(n, 8)
        fin_p = _round_up(x.shape[1], 128)
        h_p = _round_up(params[0][0].shape[1], 128)
        fout_p = _round_up(params[2][0].shape[1], 128)
        resident_bytes = 4 * (n_p * n_p + n_p * fin_p + n_p * h_p
                              + n_p * fout_p + fin_p * h_p + h_p * h_p
                              + h_p * fout_p + 3 * 128)
        # Stay well under the default scoped-VMEM limit on every generation
        # (16 MiB v5e, 32 MiB v6e/v7x); otherwise tile the adjacency.
        fused = resident_bytes <= (12 << 20)
    if fused:
        return _gcn_fused(params, x, adj)
    return _gcn_tiled(params, x, adj, tile=tile, use_bf16=use_bf16)


# ---------------------------------------------------------------------------
# Self-test
# ---------------------------------------------------------------------------

def _ref_gcn(params, x, adj):
    (w1, b1), (w2, b2), (w3, b3) = params
    hp = jax.lax.Precision.HIGHEST

    def layer(h, w, b, relu):
        o = jnp.dot(adj, jnp.dot(h, w, precision=hp), precision=hp) + b
        return jnp.maximum(o, 0.0) if relu else o

    return layer(layer(layer(x, w1, b1, True), w2, b2, True), w3, b3, False)


def _make_graph(key, n, f_in, density=0.3):
    k_x, k_adj = jax.random.split(key)
    x = jax.random.normal(k_x, (n, f_in), jnp.float32)
    a = (jax.random.uniform(k_adj, (n, n)) < density).astype(jnp.float32)
    a = jnp.maximum(a, a.T) + jnp.eye(n, dtype=jnp.float32)
    adj = a / jnp.sum(a, axis=1, keepdims=True)   # row-normalized + self loops
    return x, adj


if __name__ == "__main__":
    key = jax.random.PRNGKey(0)

    # ----- small shapes (fused single-kernel path) -----
    N, INPUT_SIZE, HIDDEN_SIZE, OUTPUT_SIZE = 16, 8, 32, 4
    k_g, k_p, k_g2, k_p2 = jax.random.split(key, 4)

    x, adj = _make_graph(k_g, N, INPUT_SIZE)
    labels = jnp.zeros((N,), jnp.int32)           # accepted but unused
    params = init_gcn_params(k_p, INPUT_SIZE, HIDDEN_SIZE, OUTPUT_SIZE)

    out = gcn_forward(params, x, adj, labels)
    jax.block_until_ready(out)
    ref = _ref_gcn(params, x, adj)
    assert out.shape == (N, OUTPUT_SIZE)
    assert jnp.allclose(out, ref, atol=1e-4, rtol=1e-4)

    # ----- larger shapes (tiled adj path, f32 and bf16) -----
    N2, IN2, HID2, OUT2 = 512, 64, 64, 16
    x2, adj2 = _make_graph(k_g2, N2, IN2)
    params2 = init_gcn_params(k_p2, IN2, HID2, OUT2)
    ref2 = _ref_gcn(params2, x2, adj2)

    out_t = gcn_forward(params2, x2, adj2, fused=False, tile=256)
    jax.block_until_ready(out_t)
    assert out_t.shape == (N2, OUT2)
    assert jnp.allclose(out_t, ref2, atol=2e-3, rtol=2e-3)

    out_bf = gcn_forward(params2, x2, adj2, fused=False, tile=256,
                         use_bf16=True)
    jax.block_until_ready(out_bf)
    assert out_bf.shape == (N2, OUT2)
    assert jnp.allclose(out_bf, ref2, atol=0.1, rtol=0.1)

    print("KERNEL_OK")
</pallas_src>

<mosaic_0001>
module attributes {stable_mosaic.version = 11 : i64} {
  func.func @_gcn_fused_kernel(%arg0: memref<16x128xf32, #tpu.memory_space<vmem>>, %arg1: memref<16x16xf32, #tpu.memory_space<vmem>>, %arg2: memref<128x128xf32, #tpu.memory_space<vmem>>, %arg3: memref<1x128xf32, #tpu.memory_space<vmem>>, %arg4: memref<128x128xf32, #tpu.memory_space<vmem>>, %arg5: memref<1x128xf32, #tpu.memory_space<vmem>>, %arg6: memref<128x128xf32, #tpu.memory_space<vmem>>, %arg7: memref<1x128xf32, #tpu.memory_space<vmem>>, %arg8: memref<16x128xf32, #tpu.memory_space<vmem>>, %arg9: memref<16x128xf32, #tpu.memory_space<vmem>>) attributes {dimension_semantics = [], scalar_prefetch = 0 : i64, scratch_operands = 1 : i64, tpu.core_type = #tpu.core_type<tc>} {
    %c0 = arith.constant 0 : index
    %c0_0 = arith.constant 0 : index
    %0 = vector.load %arg1[%c0, %c0_0] : memref<16x16xf32, #tpu.memory_space<vmem>>, vector<16x16xf32>
    %c0_1 = arith.constant 0 : index
    %c0_2 = arith.constant 0 : index
    %1 = vector.load %arg0[%c0_1, %c0_2] : memref<16x128xf32, #tpu.memory_space<vmem>>, vector<16x128xf32>
    %c0_3 = arith.constant 0 : index
    %c0_4 = arith.constant 0 : index
    %2 = vector.load %arg2[%c0_3, %c0_4] : memref<128x128xf32, #tpu.memory_space<vmem>>, vector<128x128xf32>
    %cst = arith.constant dense<0.000000e+00> : vector<16x128xf32>
    %3 = tpu.matmul %1, %2, %cst {dimension_numbers = #tpu.dot_dimension_numbers<[1], [0], [0], [1], [0, 0, 1, 1], [], []>} : vector<16x128xf32>, vector<128x128xf32>, vector<16x128xf32> -> vector<16x128xf32>
    %cst_5 = arith.constant dense<0.000000e+00> : vector<16x128xf32>
    %4 = tpu.matmul %0, %3, %cst_5 {dimension_numbers = #tpu.dot_dimension_numbers<[1], [0], [0], [1], [0, 0, 1, 1], [], []>} : vector<16x16xf32>, vector<16x128xf32>, vector<16x128xf32> -> vector<16x128xf32>
    %c0_6 = arith.constant 0 : index
    %c0_7 = arith.constant 0 : index
    %5 = vector.load %arg3[%c0_6, %c0_7] : memref<1x128xf32, #tpu.memory_space<vmem>>, vector<1x128xf32>
    %6 = vector.broadcast %5 : vector<1x128xf32> to vector<16x128xf32>
    %7 = arith.addf %4, %6 : vector<16x128xf32>
    %cst_8 = arith.constant 0.000000e+00 : f32
    %8 = vector.broadcast %cst_8 : f32 to vector<16x128xf32>
    %9 = arith.maximumf %7, %8 : vector<16x128xf32>
    %c0_9 = arith.constant 0 : index
    %c0_10 = arith.constant 0 : index
    %10 = vector.load %arg9[%c0_9, %c0_10] : memref<16x128xf32, #tpu.memory_space<vmem>>, vector<16x128xf32>
    tpu.vector_store %arg9[%c0_9, %c0_10], %9 {strides = array<i32>} : memref<16x128xf32, #tpu.memory_space<vmem>>, vector<16x128xf32>,
    %c0_11 = arith.constant 0 : index
    %c0_12 = arith.constant 0 : index
    %11 = vector.load %arg9[%c0_11, %c0_12] : memref<16x128xf32, #tpu.memory_space<vmem>>, vector<16x128xf32>
    %c0_13 = arith.constant 0 : index
    %c0_14 = arith.constant 0 : index
    %12 = vector.load %arg4[%c0_13, %c0_14] : memref<128x128xf32, #tpu.memory_space<vmem>>, vector<128x128xf32>
    %cst_15 = arith.constant dense<0.000000e+00> : vector<16x128xf32>
    %13 = tpu.matmul %11, %12, %cst_15 {dimension_numbers = #tpu.dot_dimension_numbers<[1], [0], [0], [1], [0, 0, 1, 1], [], []>} : vector<16x128xf32>, vector<128x128xf32>, vector<16x128xf32> -> vector<16x128xf32>
    %cst_16 = arith.constant dense<0.000000e+00> : vector<16x128xf32>
    %14 = tpu.matmul %0, %13, %cst_16 {dimension_numbers = #tpu.dot_dimension_numbers<[1], [0], [0], [1], [0, 0, 1, 1], [], []>} : vector<16x16xf32>, vector<16x128xf32>, vector<16x128xf32> -> vector<16x128xf32>
    %c0_17 = arith.constant 0 : index
    %c0_18 = arith.constant 0 : index
    %15 = vector.load %arg5[%c0_17, %c0_18] : memref<1x128xf32, #tpu.memory_space<vmem>>, vector<1x128xf32>
    %16 = vector.broadcast %15 : vector<1x128xf32> to vector<16x128xf32>
    %17 = arith.addf %14, %16 : vector<16x128xf32>
    %cst_19 = arith.constant 0.000000e+00 : f32
    %18 = vector.broadcast %cst_19 : f32 to vector<16x128xf32>
    %19 = arith.maximumf %17, %18 : vector<16x128xf32>
    %c0_20 = arith.constant 0 : index
    %c0_21 = arith.constant 0 : index
    %20 = vector.load %arg9[%c0_20, %c0_21] : memref<16x128xf32, #tpu.memory_space<vmem>>, vector<16x128xf32>
    tpu.vector_store %arg9[%c0_20, %c0_21], %19 {strides = array<i32>} : memref<16x128xf32, #tpu.memory_space<vmem>>, vector<16x128xf32>,
    %c0_22 = arith.constant 0 : index
    %c0_23 = arith.constant 0 : index
    %21 = vector.load %arg9[%c0_22, %c0_23] : memref<16x128xf32, #tpu.memory_space<vmem>>, vector<16x128xf32>
    %c0_24 = arith.constant 0 : index
    %c0_25 = arith.constant 0 : index
    %22 = vector.load %arg6[%c0_24, %c0_25] : memref<128x128xf32, #tpu.memory_space<vmem>>, vector<128x128xf32>
    %cst_26 = arith.constant dense<0.000000e+00> : vector<16x128xf32>
    %23 = tpu.matmul %21, %22, %cst_26 {dimension_numbers = #tpu.dot_dimension_numbers<[1], [0], [0], [1], [0, 0, 1, 1], [], []>} : vector<16x128xf32>, vector<128x128xf32>, vector<16x128xf32> -> vector<16x128xf32>
    %cst_27 = arith.constant dense<0.000000e+00> : vector<16x128xf32>
    %24 = tpu.matmul %0, %23, %cst_27 {dimension_numbers = #tpu.dot_dimension_numbers<[1], [0], [0], [1], [0, 0, 1, 1], [], []>} : vector<16x16xf32>, vector<16x128xf32>, vector<16x128xf32> -> vector<16x128xf32>
    %c0_28 = arith.constant 0 : index
    %c0_29 = arith.constant 0 : index
    %25 = vector.load %arg7[%c0_28, %c0_29] : memref<1x128xf32, #tpu.memory_space<vmem>>, vector<1x128xf32>
    %26 = vector.broadcast %25 : vector<1x128xf32> to vector<16x128xf32>
    %27 = arith.addf %24, %26 : vector<16x128xf32>
    %c0_30 = arith.constant 0 : index
    %c0_31 = arith.constant 0 : index
    %28 = vector.load %arg8[%c0_30, %c0_31] : memref<16x128xf32, #tpu.memory_space<vmem>>, vector<16x128xf32>
    tpu.vector_store %arg8[%c0_30, %c0_31], %27 {strides = array<i32>} : memref<16x128xf32, #tpu.memory_space<vmem>>, vector<16x128xf32>,
    return
  }
}

</mosaic_0001>

<llo_original>
// kernel: tpu_custom_call.1
$region0: #{tpu_custom_call.1}
  #allocation0 [shape = 'u32[]', space=smem, size = 0x4, offset = 0x4, fixed_abs, tag = 'smem constant byte address 0x4 - core index']
  #allocation1 [shape = 'u32[144,128]{1,0:T(1,128)}', space=vmem, size = 0x12000, scoped, tag = 'internal scratch']
  #allocation2 [shape = 'f32[16,128]{1,0:T(8,128)}', space=vmem, size = 0x2000, scoped, tag = 'scratch operand']
  %s0 = inlined_call_operand.hbm [shape: f32[16,128], index: 0, kind: input, shape index: {}]
  %s1 = inlined_call_operand.hbm [shape: f32[16,16], index: 1, kind: input, shape index: {}]
  %s2 = inlined_call_operand.hbm [shape: f32[128,128], index: 2, kind: input, shape index: {}]
  %s3 = inlined_call_operand.vmem [shape: f32[1,128], index: 3, kind: input, shape index: {}]
  %s4 = inlined_call_operand.hbm [shape: f32[128,128], index: 4, kind: input, shape index: {}]
  %s5 = inlined_call_operand.vmem [shape: f32[1,128], index: 5, kind: input, shape index: {}]
  %s6 = inlined_call_operand.hbm [shape: f32[128,128], index: 6, kind: input, shape index: {}]
  %s7 = inlined_call_operand.vmem [shape: f32[1,128], index: 7, kind: input, shape index: {}]
  %s8 = inlined_call_operand.hbm [shape: f32[16,128], index: 8, kind: output, shape index: {}]
  %s9 = sld [smem:[#allocation0]]
  $region62: #{tpu_custom_call.1} parent=0
    _
  %s11 = ssub.s32 1, %s9
  %s12 = scalar_select 0, %s11, %s9
  $region1: #{tpu_custom_call.1} parent=0
    #allocation3 [shape = 'u8[8192]{0}', space=vmem, size = 0x2000, scoped, tag = 'input window, operand 0, single buffered']
    #allocation4 [shape = 's32[1]{0}', space=sflag, size = 0x4, scoped, tag = 'scoped memory for tpu_custom_call.1']
    #allocation5 [shape = 's32[1]{0}', space=sflag, size = 0x4, scoped, tag = 'scoped memory for tpu_custom_call.1']
    #allocation6 [shape = 'u8[8192]{0}', space=vmem, size = 0x2000, scoped, tag = 'input window, operand 1, single buffered']
    #allocation7 [shape = 's32[1]{0}', space=sflag, size = 0x4, scoped, tag = 'scoped memory for tpu_custom_call.1']
    #allocation8 [shape = 'u8[65536]{0}', space=vmem, size = 0x10000, scoped, tag = 'input window, operand 2, single buffered']
    #allocation9 [shape = 'u8[65536]{0}', space=vmem, size = 0x10000, scoped, tag = 'input window, operand 4, single buffered']
    #allocation10 [shape = 's32[1]{0}', space=sflag, size = 0x4, scoped, tag = 'scoped memory for tpu_custom_call.1']
    #allocation11 [shape = 'u8[65536]{0}', space=vmem, size = 0x10000, scoped, tag = 'input window, operand 6, single buffered']
    #allocation12 [shape = 'u8[8192]{0}', space=vmem, size = 0x2000, scoped, tag = 'output window, operand 0, single buffered']
    %13 = vsyncpa [#allocation4], 0
    %14 = vsyncpa [#allocation7], 0
    %15 = vsyncpa [#allocation10], 0
    %16 = vsyncpa [#allocation5], 0
    // Predicated region
    $region2: #{tpu_custom_call.1} parent=1 // pred_check
      _
    $region3: #{tpu_custom_call.1} parent=1 // pred_check_branch
      %18 = sbr.rel (0) target = $region5
    $region4: #{tpu_custom_call.1} parent=1 // pred_region
      %s20 = ssub.s32 256, 256
      %21 = vsyncadd [#allocation4], %s20
      %s22 = sshll.u32 [#allocation3], 4
      %s23 = int_to_ptr.vmem [resolvable:$true] %s22
      %28 = dma.hbm_to_vmem [thread:$0]  %s0, 256, %s23, [#allocation4], 128, 128, 8
    $region5: #{tpu_custom_call.1} parent=1 // pred_fallthru
      _
    // Predicated region
    $region6: #{tpu_custom_call.1} parent=1 // pred_check
      _
    $region7: #{tpu_custom_call.1} parent=1 // pred_check_branch
      %30 = sbr.rel (0) target = $region9
    $region8: #{tpu_custom_call.1} parent=1 // pred_region
      %s32 = ssub.s32 256, 256
      %33 = vsyncadd [#allocation7], %s32
      %s34 = sshll.u32 [#allocation6], 4
      %s35 = int_to_ptr.vmem [resolvable:$true] %s34
      %40 = dma.hbm_to_vmem [thread:$0]  %s1, 256, %s35, [#allocation7], 128, 128, 8
    $region9: #{tpu_custom_call.1} parent=1 // pred_fallthru
      _
    // Predicated region
    $region10: #{tpu_custom_call.1} parent=1 // pred_check
      _
    $region11: #{tpu_custom_call.1} parent=1 // pred_check_branch
      %42 = sbr.rel (0) target = $region13
    $region12: #{tpu_custom_call.1} parent=1 // pred_region
      %s44 = ssub.s32 2048, 2048
      %45 = vsyncadd [#allocation7], %s44
      %s46 = sshll.u32 [#allocation8], 4
      %s47 = int_to_ptr.vmem [resolvable:$true] %s46
      %52 = dma.hbm_to_vmem [thread:$0]  %s2, 2048, %s47, [#allocation7], 128, 128, 8
    $region13: #{tpu_custom_call.1} parent=1 // pred_fallthru
      _
    // Predicated region
    $region14: #{tpu_custom_call.1} parent=1 // pred_check
      _
    $region15: #{tpu_custom_call.1} parent=1 // pred_check_branch
      %54 = sbr.rel (0) target = $region17
    $region16: #{tpu_custom_call.1} parent=1 // pred_region
      _
    $region17: #{tpu_custom_call.1} parent=1 // pred_fallthru
      _
    // Predicated region
    $region18: #{tpu_custom_call.1} parent=1 // pred_check
      _
    $region19: #{tpu_custom_call.1} parent=1 // pred_check_branch
      %56 = sbr.rel (0) target = $region21
    $region20: #{tpu_custom_call.1} parent=1 // pred_region
      %s58 = ssub.s32 2048, 2048
      %59 = vsyncadd [#allocation10], %s58
      %s60 = sshll.u32 [#allocation9], 4
      %s61 = int_to_ptr.vmem [resolvable:$true] %s60
      %66 = dma.hbm_to_vmem [thread:$0]  %s4, 2048, %s61, [#allocation10], 128, 128, 8
    $region21: #{tpu_custom_call.1} parent=1 // pred_fallthru
      _
    // Predicated region
    $region22: #{tpu_custom_call.1} parent=1 // pred_check
      _
    $region23: #{tpu_custom_call.1} parent=1 // pred_check_branch
      %68 = sbr.rel (0) target = $region25
    $region24: #{tpu_custom_call.1} parent=1 // pred_region
      _
    $region25: #{tpu_custom_call.1} parent=1 // pred_fallthru
      _
    // Predicated region
    $region26: #{tpu_custom_call.1} parent=1 // pred_check
      _
    $region27: #{tpu_custom_call.1} parent=1 // pred_check_branch
      %70 = sbr.rel (0) target = $region29
    $region28: #{tpu_custom_call.1} parent=1 // pred_region
      %s72 = ssub.s32 2048, 2048
      %73 = vsyncadd [#allocation10], %s72
      %s74 = sshll.u32 [#allocation11], 4
      %s75 = int_to_ptr.vmem [resolvable:$true] %s74
      %80 = dma.hbm_to_vmem [thread:$0]  %s6, 2048, %s75, [#allocation10], 128, 128, 8
    $region29: #{tpu_custom_call.1} parent=1 // pred_fallthru
      _
    // Predicated region
    $region30: #{tpu_custom_call.1} parent=1 // pred_check
      _
    $region31: #{tpu_custom_call.1} parent=1 // pred_check_branch
      %82 = sbr.rel (0) target = $region33
    $region32: #{tpu_custom_call.1} parent=1 // pred_region
      _
    $region33: #{tpu_custom_call.1} parent=1 // pred_fallthru
      _
    // Predicated region
    $region34: #{tpu_custom_call.1} parent=1 // pred_check
      _
    $region35: #{tpu_custom_call.1} parent=1 // pred_check_branch
      %84 = sbr.rel (0) target = $region37
    $region36: #{tpu_custom_call.1} parent=1 // pred_region
      %85 = dma.done [#allocation4], 256
    $region37: #{tpu_custom_call.1} parent=1 // pred_fallthru
      _
    // Predicated region
    $region38: #{tpu_custom_call.1} parent=1 // pred_check
      _
    $region39: #{tpu_custom_call.1} parent=1 // pred_check_branch
      %87 = sbr.rel (0) target = $region41
    $region40: #{tpu_custom_call.1} parent=1 // pred_region
      %88 = dma.done [#allocation7], 256
    $region41: #{tpu_custom_call.1} parent=1 // pred_fallthru
      _
    // Predicated region
    $region42: #{tpu_custom_call.1} parent=1 // pred_check
      _
    $region43: #{tpu_custom_call.1} parent=1 // pred_check_branch
      %90 = sbr.rel (0) target = $region45
    $region44: #{tpu_custom_call.1} parent=1 // pred_region
      %91 = dma.done [#allocation7], 2048
    $region45: #{tpu_custom_call.1} parent=1 // pred_fallthru
      _
    // Predicated region
    $region46: #{tpu_custom_call.1} parent=1 // pred_check
      _
    $region47: #{tpu_custom_call.1} parent=1 // pred_check_branch
      %93 = sbr.rel (0) target = $region49
    $region48: #{tpu_custom_call.1} parent=1 // pred_region
      %94 = dma.done [#allocation10], 2048
    $region49: #{tpu_custom_call.1} parent=1 // pred_fallthru
      _
    // Predicated region
    $region50: #{tpu_custom_call.1} parent=1 // pred_check
      _
    $region51: #{tpu_custom_call.1} parent=1 // pred_check_branch
      %96 = sbr.rel (0) target = $region53
    $region52: #{tpu_custom_call.1} parent=1 // pred_region
      %97 = dma.done [#allocation10], 2048
    $region53: #{tpu_custom_call.1} parent=1 // pred_fallthru
      _
    %v98 = vld [vmem:[#allocation6] sm:$0xff]
    %v99 = vld [vmem:[#allocation6 + $0x8] sm:$0xff]
    %v100 = vld [vmem:[#allocation3] sm:$0xff]
    %v101 = vld [vmem:[#allocation3 + $0x8] sm:$0xff]
    %v102 = vld [vmem:[#allocation8] sm:$0xff]
    %v103 = vld [vmem:[#allocation8 + $0x8] sm:$0xff]
    %v104 = vld [vmem:[#allocation8 + $0x10] sm:$0xff]
    %v105 = vld [vmem:[#allocation8 + $0x18] sm:$0xff]
    %v106 = vld [vmem:[#allocation8 + $0x20] sm:$0xff]
    %v107 = vld [vmem:[#allocation8 + $0x28] sm:$0xff]
    %v108 = vld [vmem:[#allocation8 + $0x30] sm:$0xff]
    %v109 = vld [vmem:[#allocation8 + $0x38] sm:$0xff]
    %v110 = vld [vmem:[#allocation8 + $0x40] sm:$0xff]
    %v111 = vld [vmem:[#allocation8 + $0x48] sm:$0xff]
    %v112 = vld [vmem:[#allocation8 + $0x50] sm:$0xff]
    %v113 = vld [vmem:[#allocation8 + $0x58] sm:$0xff]
    %v114 = vld [vmem:[#allocation8 + $0x60] sm:$0xff]
    %v115 = vld [vmem:[#allocation8 + $0x68] sm:$0xff]
    %v116 = vld [vmem:[#allocation8 + $0x70] sm:$0xff]
    %v117 = vld [vmem:[#allocation8 + $0x78] sm:$0xff]
    %118 = vmatprep.subr.mxu0 0.0
    %119 = vmatpush1.msra.mxu0 %v102
    %120 = vmatprep.subr.mxu0 0.0
    %121 = vmatpush1.msra.mxu0 %v103
    %122 = vmatprep.subr.mxu0 0.0
    %123 = vmatpush1.msra.mxu0 %v104
    %124 = vmatprep.subr.mxu0 0.0
    %125 = vmatpush1.msra.mxu0 %v105
    %126 = vmatprep.subr.mxu0 0.0
    %127 = vmatpush1.msra.mxu0 %v106
    %128 = vmatprep.subr.mxu0 0.0
    %129 = vmatpush1.msra.mxu0 %v107
    %130 = vmatprep.subr.mxu0 0.0
    %131 = vmatpush1.msra.mxu0 %v108
    %132 = vmatprep.subr.mxu0 0.0
    %133 = vmatpush1.msra.mxu0 %v109
    %134 = vmatprep.subr.mxu0 0.0
    %135 = vmatpush1.msra.mxu0 %v110
    %136 = vmatprep.subr.mxu0 0.0
    %137 = vmatpush1.msra.mxu0 %v111
    %138 = vmatprep.subr.mxu0 0.0
    %139 = vmatpush1.msra.mxu0 %v112
    %140 = vmatprep.subr.mxu0 0.0
    %141 = vmatpush1.msra.mxu0 %v113
    %142 = vmatprep.subr.mxu0 0.0
    %143 = vmatpush1.msra.mxu0 %v114
    %144 = vmatprep.subr.mxu0 0.0
    %145 = vmatpush1.msra.mxu0 %v115
    %146 = vmatprep.subr.mxu0 0.0
    %147 = vmatpush1.msra.mxu0 %v116
    %148 = vmatprep.subr.mxu0 0.0
    %149 = vmatpush1.msra.mxu0 %v117
    %150 = vmatprep.subr.mxu0 0.0
    %151 = vmatpush1.msra.mxu0 0.0
    %152 = vmatprep.subr.mxu0 0.0
    %153 = vmatpush1.msra.mxu0 0.0
    %154 = vmatprep.subr.mxu0 0.0
    %155 = vmatpush1.msra.mxu0 0.0
    %156 = vmatprep.subr.mxu0 0.0
    %157 = vmatpush1.msra.mxu0 0.0
    %158 = vmatprep.subr.mxu0 0.0
    %159 = vmatpush1.msra.mxu0 0.0
    %160 = vmatprep.subr.mxu0 0.0
    %161 = vmatpush1.msra.mxu0 0.0
    %162 = vmatprep.subr.mxu0 0.0
    %163 = vmatpush1.msra.mxu0 0.0
    %164 = vmatprep.subr.mxu0 0.0
    %165 = vmatpush1.msra.mxu0 0.0
    %166 = vmatprep.subr.mxu0 0.0
    %167 = vmatpush1.msra.mxu0 0.0
    %168 = vmatprep.subr.mxu0 0.0
    %169 = vmatpush1.msra.mxu0 0.0
    %170 = vmatprep.subr.mxu0 0.0
    %171 = vmatpush1.msra.mxu0 0.0
    %172 = vmatprep.subr.mxu0 0.0
    %173 = vmatpush1.msra.mxu0 0.0
    %174 = vmatprep.subr.mxu0 0.0
    %175 = vmatpush1.msra.mxu0 0.0
    %176 = vmatprep.subr.mxu0 0.0
    %177 = vmatpush1.msra.mxu0 0.0
    %178 = vmatprep.subr.mxu0 0.0
    %179 = vmatpush1.msra.mxu0 0.0
    %180 = vmatprep.subr.mxu0 0.0
    %181 = vmatpush1.msra.mxu0 0.0
    %182 = vmatprep.mubr.f32.mxu0 0.0
    %183 = vmatmul.mubr.f32.gmra.mrb[0].mxu0 %v100
    %v184 = vpop.f32.mrb[0].mxu0
    %v185 = vadd.f32 0.0, %v184
    %v186 = vpop.f32.mrb[0].mxu0
    %187 = vmatprep.mubr.f32.mxu0 0.0
    %188 = vmatmul.mubr.f32.gmra.mrb[0].mxu0 %v101
    %v189 = vpop.f32.mrb[0].mxu0
    %v190 = vadd.f32 0.0, %v189
    %v191 = vpop.f32.mrb[0].mxu0
    %192 = vdwg.mxu0
    %v193 = vld [vmem:[%s3] sm:$0x1]
    %v195 = vlaneseq
    %v196 = vshrl.u32 %v195, 7
    %v197 = vsub.s32 0, %v196
    %v198 = vrot.slane %v193, %v197
    %vm200 = vcmask 130048
    %v202 = vsel %vm200, %v98, 0
    %v205 = vsel %vm200, %v99, 0
    %207 = vmatprep.subr.mxu0 0.0
    %208 = vmatpush1.msra.mxu0 %v185
    %209 = vmatprep.subr.mxu0 0.0
    %210 = vmatpush1.msra.mxu0 %v190
    %211 = vmatprep.subr.mxu0 0.0
    %212 = vmatpush1.msra.mxu0 0.0
    %213 = vmatprep.subr.mxu0 0.0
    %214 = vmatpush1.msra.mxu0 0.0
    %215 = vmatprep.subr.mxu0 0.0
    %216 = vmatpush1.msra.mxu0 0.0
    %217 = vmatprep.subr.mxu0 0.0
    %218 = vmatpush1.msra.mxu0 0.0
    %219 = vmatprep.subr.mxu0 0.0
    %220 = vmatpush1.msra.mxu0 0.0
    %221 = vmatprep.subr.mxu0 0.0
    %222 = vmatpush1.msra.mxu0 0.0
    %223 = vmatprep.subr.mxu0 0.0
    %224 = vmatpush1.msra.mxu0 0.0
    %225 = vmatprep.subr.mxu0 0.0
    %226 = vmatpush1.msra.mxu0 0.0
    %227 = vmatprep.subr.mxu0 0.0
    %228 = vmatpush1.msra.mxu0 0.0
    %229 = vmatprep.subr.mxu0 0.0
    %230 = vmatpush1.msra.mxu0 0.0
    %231 = vmatprep.subr.mxu0 0.0
    %232 = vmatpush1.msra.mxu0 0.0
    %233 = vmatprep.subr.mxu0 0.0
    %234 = vmatpush1.msra.mxu0 0.0
    %235 = vmatprep.subr.mxu0 0.0
    %236 = vmatpush1.msra.mxu0 0.0
    %237 = vmatprep.subr.mxu0 0.0
    %238 = vmatpush1.msra.mxu0 0.0
    %239 = vmatprep.subr.mxu0 0.0
    %240 = vmatpush1.msra.mxu0 0.0
    %241 = vmatprep.subr.mxu0 0.0
    %242 = vmatpush1.msra.mxu0 0.0
    %243 = vmatprep.subr.mxu0 0.0
    %244 = vmatpush1.msra.mxu0 0.0
    %245 = vmatprep.subr.mxu0 0.0
    %246 = vmatpush1.msra.mxu0 0.0
    %247 = vmatprep.subr.mxu0 0.0
    %248 = vmatpush1.msra.mxu0 0.0
    %249 = vmatprep.subr.mxu0 0.0
    %250 = vmatpush1.msra.mxu0 0.0
    %251 = vmatprep.subr.mxu0 0.0
    %252 = vmatpush1.msra.mxu0 0.0
    %253 = vmatprep.subr.mxu0 0.0
    %254 = vmatpush1.msra.mxu0 0.0
    %255 = vmatprep.subr.mxu0 0.0
    %256 = vmatpush1.msra.mxu0 0.0
    %257 = vmatprep.subr.mxu0 0.0
    %258 = vmatpush1.msra.mxu0 0.0
    %259 = vmatprep.subr.mxu0 0.0
    %260 = vmatpush1.msra.mxu0 0.0
    %261 = vmatprep.subr.mxu0 0.0
    %262 = vmatpush1.msra.mxu0 0.0
    %263 = vmatprep.subr.mxu0 0.0
    %264 = vmatpush1.msra.mxu0 0.0
    %265 = vmatprep.subr.mxu0 0.0
    %266 = vmatpush1.msra.mxu0 0.0
    %267 = vmatprep.subr.mxu0 0.0
    %268 = vmatpush1.msra.mxu0 0.0
    %269 = vmatprep.subr.mxu0 0.0
    %270 = vmatpush1.msra.mxu0 0.0
    %271 = vmatprep.mubr.f32.mxu0 0.0
    %272 = vmatmul.mubr.f32.gmra.mrb[0].mxu0 %v202
    %v273 = vpop.f32.mrb[0].mxu0
    %v274 = vadd.f32 %v198, %v273
    %v275 = vpop.f32.mrb[0].mxu0
    %276 = vmatprep.mubr.f32.mxu0 0.0
    %277 = vmatmul.mubr.f32.gmra.mrb[0].mxu0 %v205
    %v278 = vpop.f32.mrb[0].mxu0
    %v279 = vadd.f32 %v198, %v278
    %v280 = vpop.f32.mrb[0].mxu0
    %281 = vdwg.mxu0
    %v282 = vmax.f32 %v274, 0.0
    %v283 = vmax.f32 %v279, 0.0
    %284 = vst [vmem:[#allocation2] sm:$0xff] %v282
    %285 = vst [vmem:[#allocation2 + $0x8] sm:$0xff] %v283
    %v286 = vld [vmem:[#allocation2] sm:$0xff]
    %v287 = vld [vmem:[#allocation2 + $0x8] sm:$0xff]
    %v288 = vld [vmem:[#allocation9] sm:$0xff]
    %v289 = vld [vmem:[#allocation9 + $0x8] sm:$0xff]
    %v290 = vld [vmem:[#allocation9 + $0x10] sm:$0xff]
    %v291 = vld [vmem:[#allocation9 + $0x18] sm:$0xff]
    %v292 = vld [vmem:[#allocation9 + $0x20] sm:$0xff]
    %v293 = vld [vmem:[#allocation9 + $0x28] sm:$0xff]
    %v294 = vld [vmem:[#allocation9 + $0x30] sm:$0xff]
    %v295 = vld [vmem:[#allocation9 + $0x38] sm:$0xff]
    %v296 = vld [vmem:[#allocation9 + $0x40] sm:$0xff]
    %v297 = vld [vmem:[#allocation9 + $0x48] sm:$0xff]
    %v298 = vld [vmem:[#allocation9 + $0x50] sm:$0xff]
    %v299 = vld [vmem:[#allocation9 + $0x58] sm:$0xff]
    %v300 = vld [vmem:[#allocation9 + $0x60] sm:$0xff]
    %v301 = vld [vmem:[#allocation9 + $0x68] sm:$0xff]
    %v302 = vld [vmem:[#allocation9 + $0x70] sm:$0xff]
    %v303 = vld [vmem:[#allocation9 + $0x78] sm:$0xff]
    %304 = vmatprep.subr.mxu0 0.0
    %305 = vmatpush1.msra.mxu0 %v288
    %306 = vmatprep.subr.mxu0 0.0
    %307 = vmatpush1.msra.mxu0 %v289
    %308 = vmatprep.subr.mxu0 0.0
    %309 = vmatpush1.msra.mxu0 %v290
    %310 = vmatprep.subr.mxu0 0.0
    %311 = vmatpush1.msra.mxu0 %v291
    %312 = vmatprep.subr.mxu0 0.0
    %313 = vmatpush1.msra.mxu0 %v292
    %314 = vmatprep.subr.mxu0 0.0
    %315 = vmatpush1.msra.mxu0 %v293
    %316 = vmatprep.subr.mxu0 0.0
    %317 = vmatpush1.msra.mxu0 %v294
    %318 = vmatprep.subr.mxu0 0.0
    %319 = vmatpush1.msra.mxu0 %v295
    %320 = vmatprep.subr.mxu0 0.0
    %321 = vmatpush1.msra.mxu0 %v296
    %322 = vmatprep.subr.mxu0 0.0
    %323 = vmatpush1.msra.mxu0 %v297
    %324 = vmatprep.subr.mxu0 0.0
    %325 = vmatpush1.msra.mxu0 %v298
    %326 = vmatprep.subr.mxu0 0.0
    %327 = vmatpush1.msra.mxu0 %v299
    %328 = vmatprep.subr.mxu0 0.0
    %329 = vmatpush1.msra.mxu0 %v300
    %330 = vmatprep.subr.mxu0 0.0
    %331 = vmatpush1.msra.mxu0 %v301
    %332 = vmatprep.subr.mxu0 0.0
    %333 = vmatpush1.msra.mxu0 %v302
    %334 = vmatprep.subr.mxu0 0.0
    %335 = vmatpush1.msra.mxu0 %v303
    %336 = vmatprep.subr.mxu0 0.0
    %337 = vmatpush1.msra.mxu0 0.0
    %338 = vmatprep.subr.mxu0 0.0
    %339 = vmatpush1.msra.mxu0 0.0
    %340 = vmatprep.subr.mxu0 0.0
    %341 = vmatpush1.msra.mxu0 0.0
    %342 = vmatprep.subr.mxu0 0.0
    %343 = vmatpush1.msra.mxu0 0.0
    %344 = vmatprep.subr.mxu0 0.0
    %345 = vmatpush1.msra.mxu0 0.0
    %346 = vmatprep.subr.mxu0 0.0
    %347 = vmatpush1.msra.mxu0 0.0
    %348 = vmatprep.subr.mxu0 0.0
    %349 = vmatpush1.msra.mxu0 0.0
    %350 = vmatprep.subr.mxu0 0.0
    %351 = vmatpush1.msra.mxu0 0.0
    %352 = vmatprep.subr.mxu0 0.0
    %353 = vmatpush1.msra.mxu0 0.0
    %354 = vmatprep.subr.mxu0 0.0
    %355 = vmatpush1.msra.mxu0 0.0
    %356 = vmatprep.subr.mxu0 0.0
    %357 = vmatpush1.msra.mxu0 0.0
    %358 = vmatprep.subr.mxu0 0.0
    %359 = vmatpush1.msra.mxu0 0.0
    %360 = vmatprep.subr.mxu0 0.0
    %361 = vmatpush1.msra.mxu0 0.0
    %362 = vmatprep.subr.mxu0 0.0
    %363 = vmatpush1.msra.mxu0 0.0
    %364 = vmatprep.subr.mxu0 0.0
    %365 = vmatpush1.msra.mxu0 0.0
    %366 = vmatprep.subr.mxu0 0.0
    %367 = vmatpush1.msra.mxu0 0.0
    %368 = vmatprep.mubr.f32.mxu0 0.0
    %369 = vmatmul.mubr.f32.gmra.mrb[0].mxu0 %v286
    %v370 = vpop.f32.mrb[0].mxu0
    %v371 = vadd.f32 0.0, %v370
    %v372 = vpop.f32.mrb[0].mxu0
    %373 = vmatprep.mubr.f32.mxu0 0.0
    %374 = vmatmul.mubr.f32.gmra.mrb[0].mxu0 %v287
    %v375 = vpop.f32.mrb[0].mxu0
    %v376 = vadd.f32 0.0, %v375
    %v377 = vpop.f32.mrb[0].mxu0
    %378 = vdwg.mxu0
    %v379 = vld [vmem:[%s5] sm:$0x1]
    %v381 = vlaneseq
    %v382 = vshrl.u32 %v381, 7
    %v383 = vsub.s32 0, %v382
    %v384 = vrot.slane %v379, %v383
    %386 = vmatprep.subr.mxu0 0.0
    %387 = vmatpush1.msra.mxu0 %v371
    %388 = vmatprep.subr.mxu0 0.0
    %389 = vmatpush1.msra.mxu0 %v376
    %390 = vmatprep.subr.mxu0 0.0
    %391 = vmatpush1.msra.mxu0 0.0
    %392 = vmatprep.subr.mxu0 0.0
    %393 = vmatpush1.msra.mxu0 0.0
    %394 = vmatprep.subr.mxu0 0.0
    %395 = vmatpush1.msra.mxu0 0.0
    %396 = vmatprep.subr.mxu0 0.0
    %397 = vmatpush1.msra.mxu0 0.0
    %398 = vmatprep.subr.mxu0 0.0
    %399 = vmatpush1.msra.mxu0 0.0
    %400 = vmatprep.subr.mxu0 0.0
    %401 = vmatpush1.msra.mxu0 0.0
    %402 = vmatprep.subr.mxu0 0.0
    %403 = vmatpush1.msra.mxu0 0.0
    %404 = vmatprep.subr.mxu0 0.0
    %405 = vmatpush1.msra.mxu0 0.0
    %406 = vmatprep.subr.mxu0 0.0
    %407 = vmatpush1.msra.mxu0 0.0
    %408 = vmatprep.subr.mxu0 0.0
    %409 = vmatpush1.msra.mxu0 0.0
    %410 = vmatprep.subr.mxu0 0.0
    %411 = vmatpush1.msra.mxu0 0.0
    %412 = vmatprep.subr.mxu0 0.0
    %413 = vmatpush1.msra.mxu0 0.0
    %414 = vmatprep.subr.mxu0 0.0
    %415 = vmatpush1.msra.mxu0 0.0
    %416 = vmatprep.subr.mxu0 0.0
    %417 = vmatpush1.msra.mxu0 0.0
    %418 = vmatprep.subr.mxu0 0.0
    %419 = vmatpush1.msra.mxu0 0.0
    %420 = vmatprep.subr.mxu0 0.0
    %421 = vmatpush1.msra.mxu0 0.0
    %422 = vmatprep.subr.mxu0 0.0
    %423 = vmatpush1.msra.mxu0 0.0
    %424 = vmatprep.subr.mxu0 0.0
    %425 = vmatpush1.msra.mxu0 0.0
    %426 = vmatprep.subr.mxu0 0.0
    %427 = vmatpush1.msra.mxu0 0.0
    %428 = vmatprep.subr.mxu0 0.0
    %429 = vmatpush1.msra.mxu0 0.0
    %430 = vmatprep.subr.mxu0 0.0
    %431 = vmatpush1.msra.mxu0 0.0
    %432 = vmatprep.subr.mxu0 0.0
    %433 = vmatpush1.msra.mxu0 0.0
    %434 = vmatprep.subr.mxu0 0.0
    %435 = vmatpush1.msra.mxu0 0.0
    %436 = vmatprep.subr.mxu0 0.0
    %437 = vmatpush1.msra.mxu0 0.0
    %438 = vmatprep.subr.mxu0 0.0
    %439 = vmatpush1.msra.mxu0 0.0
    %440 = vmatprep.subr.mxu0 0.0
    %441 = vmatpush1.msra.mxu0 0.0
    %442 = vmatprep.subr.mxu0 0.0
    %443 = vmatpush1.msra.mxu0 0.0
    %444 = vmatprep.subr.mxu0 0.0
    %445 = vmatpush1.msra.mxu0 0.0
    %446 = vmatprep.subr.mxu0 0.0
    %447 = vmatpush1.msra.mxu0 0.0
    %448 = vmatprep.subr.mxu0 0.0
    %449 = vmatpush1.msra.mxu0 0.0
    %450 = vmatprep.mubr.f32.mxu0 0.0
    %451 = vmatmul.mubr.f32.gmra.mrb[0].mxu0 %v202
    %v452 = vpop.f32.mrb[0].mxu0
    %v453 = vadd.f32 %v384, %v452
    %v454 = vpop.f32.mrb[0].mxu0
    %455 = vmatprep.mubr.f32.mxu0 0.0
    %456 = vmatmul.mubr.f32.gmra.mrb[0].mxu0 %v205
    %v457 = vpop.f32.mrb[0].mxu0
    %v458 = vadd.f32 %v384, %v457
    %v459 = vpop.f32.mrb[0].mxu0
    %460 = vdwg.mxu0
    %v461 = vmax.f32 %v453, 0.0
    %v462 = vmax.f32 %v458, 0.0
    %463 = vst [vmem:[#allocation2] sm:$0xff] %v461
    %464 = vst [vmem:[#allocation2 + $0x8] sm:$0xff] %v462
    %v465 = vld [vmem:[#allocation2] sm:$0xff]
    %v466 = vld [vmem:[#allocation2 + $0x8] sm:$0xff]
    %v467 = vld [vmem:[#allocation11] sm:$0xff]
    %v468 = vld [vmem:[#allocation11 + $0x8] sm:$0xff]
    %v469 = vld [vmem:[#allocation11 + $0x10] sm:$0xff]
    %v470 = vld [vmem:[#allocation11 + $0x18] sm:$0xff]
    %v471 = vld [vmem:[#allocation11 + $0x20] sm:$0xff]
    %v472 = vld [vmem:[#allocation11 + $0x28] sm:$0xff]
    %v473 = vld [vmem:[#allocation11 + $0x30] sm:$0xff]
    %v474 = vld [vmem:[#allocation11 + $0x38] sm:$0xff]
    %v475 = vld [vmem:[#allocation11 + $0x40] sm:$0xff]
    %v476 = vld [vmem:[#allocation11 + $0x48] sm:$0xff]
    %v477 = vld [vmem:[#allocation11 + $0x50] sm:$0xff]
    %v478 = vld [vmem:[#allocation11 + $0x58] sm:$0xff]
    %v479 = vld [vmem:[#allocation11 + $0x60] sm:$0xff]
    %v480 = vld [vmem:[#allocation11 + $0x68] sm:$0xff]
    %v481 = vld [vmem:[#allocation11 + $0x70] sm:$0xff]
    %v482 = vld [vmem:[#allocation11 + $0x78] sm:$0xff]
    %483 = vmatprep.subr.mxu0 0.0
    %484 = vmatpush1.msra.mxu0 %v467
    %485 = vmatprep.subr.mxu0 0.0
    %486 = vmatpush1.msra.mxu0 %v468
    %487 = vmatprep.subr.mxu0 0.0
    %488 = vmatpush1.msra.mxu0 %v469
    %489 = vmatprep.subr.mxu0 0.0
    %490 = vmatpush1.msra.mxu0 %v470
    %491 = vmatprep.subr.mxu0 0.0
    %492 = vmatpush1.msra.mxu0 %v471
    %493 = vmatprep.subr.mxu0 0.0
    %494 = vmatpush1.msra.mxu0 %v472
    %495 = vmatprep.subr.mxu0 0.0
    %496 = vmatpush1.msra.mxu0 %v473
    %497 = vmatprep.subr.mxu0 0.0
    %498 = vmatpush1.msra.mxu0 %v474
    %499 = vmatprep.subr.mxu0 0.0
    %500 = vmatpush1.msra.mxu0 %v475
    %501 = vmatprep.subr.mxu0 0.0
    %502 = vmatpush1.msra.mxu0 %v476
    %503 = vmatprep.subr.mxu0 0.0
    %504 = vmatpush1.msra.mxu0 %v477
    %505 = vmatprep.subr.mxu0 0.0
    %506 = vmatpush1.msra.mxu0 %v478
    %507 = vmatprep.subr.mxu0 0.0
    %508 = vmatpush1.msra.mxu0 %v479
    %509 = vmatprep.subr.mxu0 0.0
    %510 = vmatpush1.msra.mxu0 %v480
    %511 = vmatprep.subr.mxu0 0.0
    %512 = vmatpush1.msra.mxu0 %v481
    %513 = vmatprep.subr.mxu0 0.0
    %514 = vmatpush1.msra.mxu0 %v482
    %515 = vmatprep.subr.mxu0 0.0
    %516 = vmatpush1.msra.mxu0 0.0
    %517 = vmatprep.subr.mxu0 0.0
    %518 = vmatpush1.msra.mxu0 0.0
    %519 = vmatprep.subr.mxu0 0.0
    %520 = vmatpush1.msra.mxu0 0.0
    %521 = vmatprep.subr.mxu0 0.0
    %522 = vmatpush1.msra.mxu0 0.0
    %523 = vmatprep.subr.mxu0 0.0
    %524 = vmatpush1.msra.mxu0 0.0
    %525 = vmatprep.subr.mxu0 0.0
    %526 = vmatpush1.msra.mxu0 0.0
    %527 = vmatprep.subr.mxu0 0.0
    %528 = vmatpush1.msra.mxu0 0.0
    %529 = vmatprep.subr.mxu0 0.0
    %530 = vmatpush1.msra.mxu0 0.0
    %531 = vmatprep.subr.mxu0 0.0
    %532 = vmatpush1.msra.mxu0 0.0
    %533 = vmatprep.subr.mxu0 0.0
    %534 = vmatpush1.msra.mxu0 0.0
    %535 = vmatprep.subr.mxu0 0.0
    %536 = vmatpush1.msra.mxu0 0.0
    %537 = vmatprep.subr.mxu0 0.0
    %538 = vmatpush1.msra.mxu0 0.0
    %539 = vmatprep.subr.mxu0 0.0
    %540 = vmatpush1.msra.mxu0 0.0
    %541 = vmatprep.subr.mxu0 0.0
    %542 = vmatpush1.msra.mxu0 0.0
    %543 = vmatprep.subr.mxu0 0.0
    %544 = vmatpush1.msra.mxu0 0.0
    %545 = vmatprep.subr.mxu0 0.0
    %546 = vmatpush1.msra.mxu0 0.0
    %547 = vmatprep.mubr.f32.mxu0 0.0
    %548 = vmatmul.mubr.f32.gmra.mrb[0].mxu0 %v465
    %v549 = vpop.f32.mrb[0].mxu0
    %v550 = vadd.f32 0.0, %v549
    %v551 = vpop.f32.mrb[0].mxu0
    %552 = vmatprep.mubr.f32.mxu0 0.0
    %553 = vmatmul.mubr.f32.gmra.mrb[0].mxu0 %v466
    %v554 = vpop.f32.mrb[0].mxu0
    %v555 = vadd.f32 0.0, %v554
    %v556 = vpop.f32.mrb[0].mxu0
    %557 = vdwg.mxu0
    %v558 = vld [vmem:[%s7] sm:$0x1]
    %v560 = vlaneseq
    %v561 = vshrl.u32 %v560, 7
    %v562 = vsub.s32 0, %v561
    %v563 = vrot.slane %v558, %v562
    %565 = vmatprep.subr.mxu0 0.0
    %566 = vmatpush1.msra.mxu0 %v550
    %567 = vmatprep.subr.mxu0 0.0
    %568 = vmatpush1.msra.mxu0 %v555
    %569 = vmatprep.subr.mxu0 0.0
    %570 = vmatpush1.msra.mxu0 0.0
    %571 = vmatprep.subr.mxu0 0.0
    %572 = vmatpush1.msra.mxu0 0.0
    %573 = vmatprep.subr.mxu0 0.0
    %574 = vmatpush1.msra.mxu0 0.0
    %575 = vmatprep.subr.mxu0 0.0
    %576 = vmatpush1.msra.mxu0 0.0
    %577 = vmatprep.subr.mxu0 0.0
    %578 = vmatpush1.msra.mxu0 0.0
    %579 = vmatprep.subr.mxu0 0.0
    %580 = vmatpush1.msra.mxu0 0.0
    %581 = vmatprep.subr.mxu0 0.0
    %582 = vmatpush1.msra.mxu0 0.0
    %583 = vmatprep.subr.mxu0 0.0
    %584 = vmatpush1.msra.mxu0 0.0
    %585 = vmatprep.subr.mxu0 0.0
    %586 = vmatpush1.msra.mxu0 0.0
    %587 = vmatprep.subr.mxu0 0.0
    %588 = vmatpush1.msra.mxu0 0.0
    %589 = vmatprep.subr.mxu0 0.0
    %590 = vmatpush1.msra.mxu0 0.0
    %591 = vmatprep.subr.mxu0 0.0
    %592 = vmatpush1.msra.mxu0 0.0
    %593 = vmatprep.subr.mxu0 0.0
    %594 = vmatpush1.msra.mxu0 0.0
    %595 = vmatprep.subr.mxu0 0.0
    %596 = vmatpush1.msra.mxu0 0.0
    %597 = vmatprep.subr.mxu0 0.0
    %598 = vmatpush1.msra.mxu0 0.0
    %599 = vmatprep.subr.mxu0 0.0
    %600 = vmatpush1.msra.mxu0 0.0
    %601 = vmatprep.subr.mxu0 0.0
    %602 = vmatpush1.msra.mxu0 0.0
    %603 = vmatprep.subr.mxu0 0.0
    %604 = vmatpush1.msra.mxu0 0.0
    %605 = vmatprep.subr.mxu0 0.0
    %606 = vmatpush1.msra.mxu0 0.0
    %607 = vmatprep.subr.mxu0 0.0
    %608 = vmatpush1.msra.mxu0 0.0
    %609 = vmatprep.subr.mxu0 0.0
    %610 = vmatpush1.msra.mxu0 0.0
    %611 = vmatprep.subr.mxu0 0.0
    %612 = vmatpush1.msra.mxu0 0.0
    %613 = vmatprep.subr.mxu0 0.0
    %614 = vmatpush1.msra.mxu0 0.0
    %615 = vmatprep.subr.mxu0 0.0
    %616 = vmatpush1.msra.mxu0 0.0
    %617 = vmatprep.subr.mxu0 0.0
    %618 = vmatpush1.msra.mxu0 0.0
    %619 = vmatprep.subr.mxu0 0.0
    %620 = vmatpush1.msra.mxu0 0.0
    %621 = vmatprep.subr.mxu0 0.0
    %622 = vmatpush1.msra.mxu0 0.0
    %623 = vmatprep.subr.mxu0 0.0
    %624 = vmatpush1.msra.mxu0 0.0
    %625 = vmatprep.subr.mxu0 0.0
    %626 = vmatpush1.msra.mxu0 0.0
    %627 = vmatprep.subr.mxu0 0.0
    %628 = vmatpush1.msra.mxu0 0.0
    %629 = vmatprep.mubr.f32.mxu0 0.0
    %630 = vmatmul.mubr.f32.gmra.mrb[0].mxu0 %v202
    %v631 = vpop.f32.mrb[0].mxu0
    %v632 = vadd.f32 %v563, %v631
    %v633 = vpop.f32.mrb[0].mxu0
    %634 = vmatprep.mubr.f32.mxu0 0.0
    %635 = vmatmul.mubr.f32.gmra.mrb[0].mxu0 %v205
    %v636 = vpop.f32.mrb[0].mxu0
    %v637 = vadd.f32 %v563, %v636
    %v638 = vpop.f32.mrb[0].mxu0
    %639 = vdwg.mxu0
    %640 = vst [vmem:[#allocation12] sm:$0xff] %v632
    %641 = vst [vmem:[#allocation12 + $0x8] sm:$0xff] %v637
    // Predicated region
    $region54: #{tpu_custom_call.1} parent=1 // pred_check
      _
    $region55: #{tpu_custom_call.1} parent=1 // pred_check_branch
      %643 = sbr.rel (0) target = $region57
    $region56: #{tpu_custom_call.1} parent=1 // pred_region
      %s645 = ssub.s32 256, 256
      %646 = vsyncadd [#allocation5], %s645
      %s647 = sshll.u32 [#allocation12], 4
      %s648 = int_to_ptr.vmem [resolvable:$true] %s647
      %653 = dma.vmem_to_hbm [thread:$0]  %s648, 256, %s8, [#allocation5], 128, 128, 8
    $region57: #{tpu_custom_call.1} parent=1 // pred_fallthru
      _
    // Predicated region
    $region58: #{tpu_custom_call.1} parent=1 // pred_check
      _
    $region59: #{tpu_custom_call.1} parent=1 // pred_check_branch
      %655 = sbr.rel (0) target = $region61
    $region60: #{tpu_custom_call.1} parent=1 // pred_region
      %656 = dma.done [#allocation5], 256
    $region61: #{tpu_custom_call.1} parent=1 // pred_fallthru
      _
    %657 = vsyncpa [#allocation4], 1
    %658 = vsyncpa [#allocation7], 1
    %659 = vsyncpa [#allocation10], 1
    %660 = vsyncpa [#allocation5], 1

</llo_original>
